<compile_context>
chip_gen: v7x
topology: tpu7x:2x2x1
jax: 0.10.0
libtpu: 0.0.40
codegen_flags: <defaults>
</compile_context>

<pallas_src>
import jax
import jax.numpy as jnp
from jax import lax
from jax.experimental import pallas as pl
from jax.experimental.pallas import tpu as pltpu

_LANE = 128


def dc_and_ce_loss(net_output, target, *, weight_ce=1.0, weight_dice=1.0,
                   smooth=1.0, ts_target=512):
    """net_output: (B, C, *spatial) logits; target: (B, 1, *spatial) int labels.

    Matches DC_and_CE_loss(soft_dice_kwargs={}, ce_kwargs={}).forward
    (aggregate='sum', batch_dice=False, do_bg=True, smooth=1.0).
    """
    B, C = int(net_output.shape[0]), int(net_output.shape[1])
    if target.ndim == net_output.ndim - 1:
        target = target[:, None]
    HW = 1
    for d in net_output.shape[2:]:
        HW *= int(d)

    # ---- repack spatial: HW -> (S, 128) ---------------------------------
    S = -(-HW // _LANE)
    HW128 = S * _LANE
    logits = net_output.reshape(B, C, HW)        # keep dtype (bf16 halves HBM)
    labels = target.reshape(B, 1, HW)
    if HW128 != HW:
        # Only the <128-pixel alignment pad is ever materialized; non-dividing
        # tiles are masked in-kernel instead of padding the whole tensor.
        logits = jnp.pad(logits, ((0, 0), (0, 0), (0, HW128 - HW)))
        labels = jnp.pad(labels, ((0, 0), (0, 0), (0, HW128 - HW)),
                         constant_values=C)      # out-of-range -> excluded
    logits4 = logits.reshape(B, C, S, _LANE)
    labels4 = labels.reshape(B, 1, S, _LANE)

    # ---- tiling ----------------------------------------------------------
    if S <= ts_target:
        TS = S                                   # single full spatial block
    else:
        TS = max(8, (int(ts_target) // 8) * 8)
        # keep double-buffered inputs comfortably inside scoped VMEM
        while TS > 64 and 2 * TS * _LANE * (C + 1) * 4 > (8 << 20):
            TS //= 2
    n_hw = -(-S // TS)
    # 2-way spatial split so both v7x TensorCores stay busy when B is odd / 1.
    n_splits = 2 if (B % 2 == 1 and n_hw >= 2) else 1
    n_half = -(-n_hw // n_splits)
    oob_steps = n_splits * n_half != n_hw        # duplicate (clamped) tail tiles
    needs_mask = n_splits * n_half * TS != S     # some tile contains rows >= S
    ACC_R = 8 if TS % 8 == 0 else TS             # folded accumulator rows

    use_i8 = (C < 127) and (TS % 32 == 0)        # int8 labels: 4x less HBM
    labels4 = labels4.astype(jnp.int8 if use_i8 else jnp.int32)

    # ---- kernel -----------------------------------------------------------
    def kernel(logit_ref, tgt_ref, tp_ref, sp_ref, cnt_ref, ce_ref,
               acc_tp, acc_sp, acc_cnt, acc_ce):
        s_idx = pl.program_id(2)
        n_s = pl.num_programs(2)

        @pl.when(s_idx == 0)
        def _init():
            acc_tp[...] = jnp.zeros_like(acc_tp)
            acc_sp[...] = jnp.zeros_like(acc_sp)
            acc_cnt[...] = jnp.zeros_like(acc_cnt)
            acc_ce[...] = jnp.zeros_like(acc_ce)

        # load + f32-cast each logit channel exactly once
        xs = [logit_ref[0, c].astype(jnp.float32) for c in range(C)]
        labels_t = tgt_ref[0, 0].astype(jnp.int32)

        if needs_mask:
            row = lax.broadcasted_iota(jnp.int32, (TS, _LANE), 0)
            g_row = (pl.program_id(1) * n_half + s_idx) * TS + row
            inb = g_row < S
            labels_t = jnp.where(inb, labels_t, C)        # exclude OOB rows
            xs = [jnp.where(inb, x, 0.0) for x in xs]     # sanitize garbage rows

        # numerically-stable softmax pieces (small static channel loop)
        m = xs[0]
        for c in range(1, C):
            m = jnp.maximum(m, xs[c])
        es, ssum = [], None
        for c in range(C):
            e = jnp.exp(xs[c] - m)
            es.append(e)
            ssum = e if ssum is None else ssum + e
        inv = pl.reciprocal(ssum, approx=True)
        inv = inv * (2.0 - ssum * inv)                    # Newton -> ~f32 exact
        log_s = jnp.log(ssum)

        valid = ((labels_t >= 0) & (labels_t < C)).astype(jnp.float32)
        inv_v = inv * valid                               # padded/invalid -> p=0

        def fold(a):                                      # (TS,128)->(ACC_R,128)
            if ACC_R == TS:
                return a
            return jnp.sum(a.reshape(TS // ACC_R, ACC_R, _LANE), axis=0)

        x_lab = None
        for c in range(C):
            oh = (labels_t == c).astype(jnp.float32)
            p = es[c] * inv_v
            acc_tp[c] += fold(p * oh)
            acc_sp[c] += fold(p)                          # fp = sum_p - tp later
            acc_cnt[c] += fold(oh)                        # fn = cnt   - tp later
            t = oh * xs[c]
            x_lab = t if x_lab is None else x_lab + t

        # CE numerator: sum over valid pixels of (m + log_s - x[label])
        acc_ce[...] += fold(valid * (m + log_s) - x_lab)

        @pl.when(s_idx == n_s - 1)
        def _finalize():
            def red(a):                                   # (C,ACC_R,128)->(C,1)
                return jnp.sum(jnp.sum(a, axis=2), axis=1, keepdims=True)
            tp_ref[0, 0] = red(acc_tp[...])
            sp_ref[0, 0] = red(acc_sp[...])
            cnt_ref[0, 0] = red(acc_cnt[...])
            ce_ref[0, 0] = jnp.sum(jnp.sum(acc_ce[...], axis=1, keepdims=True),
                                   axis=0, keepdims=True)

    # ---- specs / launch ----------------------------------------------------
    def sp_block(h, s):
        idx = h * n_half + s
        if oob_steps:
            idx = jnp.minimum(idx, n_hw - 1)   # duplicate tail tile (fully masked)
        return idx

    stat_shape = jax.ShapeDtypeStruct((B, n_splits, C, 1), jnp.float32)
    stat_spec = pl.BlockSpec((1, 1, C, 1), lambda b, h, s: (b, h, 0, 0))

    logit_item = net_output.dtype.itemsize
    label_item = 1 if use_i8 else 4
    tile_bytes = TS * _LANE * (C * logit_item + label_item)
    scratch_bytes = (3 * C + 1) * ACC_R * _LANE * 4
    vmem_limit = int(min(max(3 * tile_bytes + scratch_bytes + (4 << 20), 16 << 20),
                         48 << 20))

    tp_s, sp_s, cnt_s, ce_s = pl.pallas_call(
        kernel,
        out_shape=(stat_shape, stat_shape, stat_shape,
                   jax.ShapeDtypeStruct((B, n_splits, 1, 1), jnp.float32)),
        grid_spec=pltpu.PrefetchScalarGridSpec(
            num_scalar_prefetch=0,
            grid=(B, n_splits, n_half),                 # spatial reduction last
            in_specs=[
                pl.BlockSpec((1, C, TS, _LANE),
                             lambda b, h, s: (b, 0, sp_block(h, s), 0)),
                pl.BlockSpec((1, 1, TS, _LANE),
                             lambda b, h, s: (b, 0, sp_block(h, s), 0)),
            ],
            out_specs=[stat_spec, stat_spec, stat_spec,
                       pl.BlockSpec((1, 1, 1, 1), lambda b, h, s: (b, h, 0, 0))],
            scratch_shapes=[
                pltpu.VMEM((C, ACC_R, _LANE), jnp.float32),   # tp accumulator
                pltpu.VMEM((C, ACC_R, _LANE), jnp.float32),   # sum_p accumulator
                pltpu.VMEM((C, ACC_R, _LANE), jnp.float32),   # label-count accum
                pltpu.VMEM((ACC_R, _LANE), jnp.float32),      # CE numerator accum
            ],
        ),
        compiler_params=pltpu.CompilerParams(
            dimension_semantics=("parallel", "parallel", "arbitrary"),
            vmem_limit_bytes=vmem_limit),
    )(logits4, labels4)

    # ---- tiny scalar epilogue (stays in JAX) -------------------------------
    tp = jnp.sum(tp_s, axis=1)[:, :, 0]                   # (B, C)
    sum_p = jnp.sum(sp_s, axis=1)[:, :, 0]
    cnt = jnp.sum(cnt_s, axis=1)[:, :, 0]
    ce_sum = jnp.sum(ce_s, axis=(1, 2, 3))                # (B,)

    fp = sum_p - tp
    fn = cnt - tp
    # SoftDiceLoss (batch_dice=False, do_bg=True, smooth=1.0)
    dc = (2.0 * tp + smooth) / (2.0 * tp + fp + fn + smooth)
    dice_loss = -jnp.mean(dc)
    # CrossentropyND: mean over all B*H*W pixels
    ce_loss = jnp.sum(ce_sum) / float(B * HW)
    return weight_ce * ce_loss + weight_dice * dice_loss


def _reference(net_output, target, *, weight_ce=1.0, weight_dice=1.0, smooth=1.0):
    """Pure-JAX reference mirroring the PyTorch module, for sanity checks."""
    B, C = net_output.shape[:2]
    if target.ndim == net_output.ndim - 1:
        target = target[:, None]
    x = jax.nn.softmax(net_output.astype(jnp.float32), axis=1)
    onehot = jax.nn.one_hot(target[:, 0], C, axis=1, dtype=jnp.float32)
    spatial = tuple(range(2, net_output.ndim))
    tp = jnp.sum(x * onehot, axis=spatial)
    fp = jnp.sum(x * (1 - onehot), axis=spatial)
    fn = jnp.sum((1 - x) * onehot, axis=spatial)
    dc = (2 * tp + smooth) / (2 * tp + fp + fn + smooth)
    dice_loss = -jnp.mean(dc)
    logp = jax.nn.log_softmax(net_output.astype(jnp.float32), axis=1)
    ce = -jnp.mean(jnp.sum(onehot * logp, axis=1))
    return weight_ce * ce + weight_dice * dice_loss


if __name__ == "__main__":
    key = jax.random.PRNGKey(0)

    def check(b, c, h, w, dtype, ts_target, tol):
        kk = jax.random.fold_in(key, b * 1000003 + c * 10007 + h * 101 + w)
        kx, ky = jax.random.split(kk)
        logits = jax.random.normal(kx, (b, c, h, w), dtype=jnp.float32).astype(dtype)
        labels = jax.random.randint(ky, (b, 1, h, w), 0, c, dtype=jnp.int32)
        out = jax.block_until_ready(dc_and_ce_loss(logits, labels,
                                                   ts_target=ts_target))
        ref = jax.block_until_ready(_reference(logits, labels))
        assert jnp.allclose(out, ref, atol=tol, rtol=tol), (b, c, h, w, out, ref)

    # base case from the module spec (f32, int32 labels, single spatial block)
    check(2, 4, 16, 16, jnp.float32, 512, 1e-4)
    # bf16 logits + int8 labels + 2-way spatial split + tail masking / clamped tiles
    check(1, 3, 96, 96, jnp.bfloat16, 32, 1e-4)
    # spatial size not a multiple of 128 -> 128-alignment pad + label=C exclusion
    check(2, 2, 15, 15, jnp.float32, 512, 1e-4)

    print("KERNEL_OK")
</pallas_src>

<mosaic_0001>
module attributes {stable_mosaic.version = 11 : i64} {
  func.func @kernel(%arg0: i32, %arg1: i32, %arg2: i32, %arg3: memref<1x4x2x128xf32, #tpu.memory_space<vmem>>, %arg4: memref<1x1x2x128xi32, #tpu.memory_space<vmem>>, %arg5: memref<1x1x4x1xf32, #tpu.memory_space<vmem>>, %arg6: memref<1x1x4x1xf32, #tpu.memory_space<vmem>>, %arg7: memref<1x1x4x1xf32, #tpu.memory_space<vmem>>, %arg8: memref<1x1x1x1xf32, #tpu.memory_space<vmem>>, %arg9: memref<4x2x128xf32, #tpu.memory_space<vmem>>, %arg10: memref<4x2x128xf32, #tpu.memory_space<vmem>>, %arg11: memref<4x2x128xf32, #tpu.memory_space<vmem>>, %arg12: memref<2x128xf32, #tpu.memory_space<vmem>>) attributes {dimension_semantics = [#tpu.dimension_semantics<parallel>, #tpu.dimension_semantics<parallel>, #tpu.dimension_semantics<arbitrary>], iteration_bounds = array<i64: 2, 1, 1>, scalar_prefetch = 0 : i64, scratch_operands = 4 : i64, tpu.core_type = #tpu.core_type<tc>, window_params = [{transform_indices = @transform_0, window_bounds = array<i64: 1, 4, 2, 128>}, {transform_indices = @transform_1, window_bounds = array<i64: 1, 1, 2, 128>}, {transform_indices = @transform_2, window_bounds = array<i64: 1, 1, 4, 1>}, {transform_indices = @transform_3, window_bounds = array<i64: 1, 1, 4, 1>}, {transform_indices = @transform_4, window_bounds = array<i64: 1, 1, 4, 1>}, {transform_indices = @transform_5, window_bounds = array<i64: 1, 1, 1, 1>}]} {
    %c0_i32 = arith.constant 0 : i32
    %0 = arith.cmpi eq, %arg2, %c0_i32 : i32
    %1 = arith.extui %0 : i1 to i32
    %c0_i32_0 = arith.constant 0 : i32
    %2 = arith.cmpi ne, %1, %c0_i32_0 : i32
    scf.if %2 {
      %cst_97 = arith.constant 0.000000e+00 : f32
      %153 = vector.broadcast %cst_97 : f32 to vector<4x2x128xf32>
      %c0_98 = arith.constant 0 : index
      %c0_99 = arith.constant 0 : index
      %c0_100 = arith.constant 0 : index
      %154 = vector.load %arg9[%c0_98, %c0_99, %c0_100] : memref<4x2x128xf32, #tpu.memory_space<vmem>>, vector<4x2x128xf32>
      tpu.vector_store %arg9[%c0_98, %c0_99, %c0_100], %153 {strides = array<i32>} : memref<4x2x128xf32, #tpu.memory_space<vmem>>, vector<4x2x128xf32>,
      %cst_101 = arith.constant 0.000000e+00 : f32
      %155 = vector.broadcast %cst_101 : f32 to vector<4x2x128xf32>
      %c0_102 = arith.constant 0 : index
      %c0_103 = arith.constant 0 : index
      %c0_104 = arith.constant 0 : index
      %156 = vector.load %arg10[%c0_102, %c0_103, %c0_104] : memref<4x2x128xf32, #tpu.memory_space<vmem>>, vector<4x2x128xf32>
      tpu.vector_store %arg10[%c0_102, %c0_103, %c0_104], %155 {strides = array<i32>} : memref<4x2x128xf32, #tpu.memory_space<vmem>>, vector<4x2x128xf32>,
      %cst_105 = arith.constant 0.000000e+00 : f32
      %157 = vector.broadcast %cst_105 : f32 to vector<4x2x128xf32>
      %c0_106 = arith.constant 0 : index
      %c0_107 = arith.constant 0 : index
      %c0_108 = arith.constant 0 : index
      %158 = vector.load %arg11[%c0_106, %c0_107, %c0_108] : memref<4x2x128xf32, #tpu.memory_space<vmem>>, vector<4x2x128xf32>
      tpu.vector_store %arg11[%c0_106, %c0_107, %c0_108], %157 {strides = array<i32>} : memref<4x2x128xf32, #tpu.memory_space<vmem>>, vector<4x2x128xf32>,
      %cst_109 = arith.constant 0.000000e+00 : f32
      %159 = vector.broadcast %cst_109 : f32 to vector<2x128xf32>
      %c0_110 = arith.constant 0 : index
      %c0_111 = arith.constant 0 : index
      %160 = vector.load %arg12[%c0_110, %c0_111] : memref<2x128xf32, #tpu.memory_space<vmem>>, vector<2x128xf32>
      tpu.vector_store %arg12[%c0_110, %c0_111], %159 {strides = array<i32>} : memref<2x128xf32, #tpu.memory_space<vmem>>, vector<2x128xf32>,
    } else {
    }
    %c0 = arith.constant 0 : index
    %c0_1 = arith.constant 0 : index
    %c0_2 = arith.constant 0 : index
    %c0_3 = arith.constant 0 : index
    %3 = vector.load %arg3[%c0, %c0_1, %c0_2, %c0_3] : memref<1x4x2x128xf32, #tpu.memory_space<vmem>>, vector<1x1x2x128xf32>
    %4 = vector.shape_cast %3 : vector<1x1x2x128xf32> to vector<2x128xf32>
    %c0_4 = arith.constant 0 : index
    %c1 = arith.constant 1 : index
    %c0_5 = arith.constant 0 : index
    %c0_6 = arith.constant 0 : index
    %5 = vector.load %arg3[%c0_4, %c1, %c0_5, %c0_6] : memref<1x4x2x128xf32, #tpu.memory_space<vmem>>, vector<1x1x2x128xf32>
    %6 = vector.shape_cast %5 : vector<1x1x2x128xf32> to vector<2x128xf32>
    %c0_7 = arith.constant 0 : index
    %c2 = arith.constant 2 : index
    %c0_8 = arith.constant 0 : index
    %c0_9 = arith.constant 0 : index
    %7 = vector.load %arg3[%c0_7, %c2, %c0_8, %c0_9] : memref<1x4x2x128xf32, #tpu.memory_space<vmem>>, vector<1x1x2x128xf32>
    %8 = vector.shape_cast %7 : vector<1x1x2x128xf32> to vector<2x128xf32>
    %c0_10 = arith.constant 0 : index
    %c3 = arith.constant 3 : index
    %c0_11 = arith.constant 0 : index
    %c0_12 = arith.constant 0 : index
    %9 = vector.load %arg3[%c0_10, %c3, %c0_11, %c0_12] : memref<1x4x2x128xf32, #tpu.memory_space<vmem>>, vector<1x1x2x128xf32>
    %10 = vector.shape_cast %9 : vector<1x1x2x128xf32> to vector<2x128xf32>
    %c0_13 = arith.constant 0 : index
    %c0_14 = arith.constant 0 : index
    %c0_15 = arith.constant 0 : index
    %c0_16 = arith.constant 0 : index
    %11 = vector.load %arg4[%c0_13, %c0_14, %c0_15, %c0_16] : memref<1x1x2x128xi32, #tpu.memory_space<vmem>>, vector<1x1x2x128xi32>
    %12 = vector.shape_cast %11 : vector<1x1x2x128xi32> to vector<2x128xi32>
    %13 = arith.maximumf %4, %6 : vector<2x128xf32>
    %14 = arith.maximumf %13, %8 : vector<2x128xf32>
    %15 = arith.maximumf %14, %10 : vector<2x128xf32>
    %16 = arith.subf %4, %15 : vector<2x128xf32>
    %17 = math.exp %16 : vector<2x128xf32>
    %18 = arith.subf %6, %15 : vector<2x128xf32>
    %19 = math.exp %18 : vector<2x128xf32>
    %20 = arith.addf %17, %19 : vector<2x128xf32>
    %21 = arith.subf %8, %15 : vector<2x128xf32>
    %22 = math.exp %21 : vector<2x128xf32>
    %23 = arith.addf %20, %22 : vector<2x128xf32>
    %24 = arith.subf %10, %15 : vector<2x128xf32>
    %25 = math.exp %24 : vector<2x128xf32>
    %26 = arith.addf %23, %25 : vector<2x128xf32>
    %27 = tpu.reciprocal %26 {approx = true} : vector<2x128xf32> -> vector<2x128xf32>
    %28 = arith.mulf %26, %27 : vector<2x128xf32>
    %cst = arith.constant 2.000000e+00 : f32
    %29 = vector.broadcast %cst : f32 to vector<2x128xf32>
    %30 = arith.subf %29, %28 : vector<2x128xf32>
    %31 = arith.mulf %27, %30 : vector<2x128xf32>
    %32 = math.log %26 : vector<2x128xf32>
    %c0_i32_17 = arith.constant 0 : i32
    %33 = vector.broadcast %c0_i32_17 : i32 to vector<2x128xi32>
    %34 = arith.cmpi sge, %12, %33 : vector<2x128xi32>
    %c4_i32 = arith.constant 4 : i32
    %35 = vector.broadcast %c4_i32 : i32 to vector<2x128xi32>
    %36 = arith.cmpi slt, %12, %35 : vector<2x128xi32>
    %37 = arith.andi %34, %36 : vector<2x128xi1>
    %38 = arith.extui %37 : vector<2x128xi1> to vector<2x128xi32>
    %39 = arith.sitofp %38 : vector<2x128xi32> to vector<2x128xf32>
    %40 = arith.mulf %31, %39 : vector<2x128xf32>
    %c0_i32_18 = arith.constant 0 : i32
    %41 = vector.broadcast %c0_i32_18 : i32 to vector<2x128xi32>
    %42 = arith.cmpi eq, %12, %41 : vector<2x128xi32>
    %43 = arith.extui %42 : vector<2x128xi1> to vector<2x128xi32>
    %44 = arith.sitofp %43 : vector<2x128xi32> to vector<2x128xf32>
    %45 = arith.mulf %17, %40 : vector<2x128xf32>
    %c0_19 = arith.constant 0 : index
    %c0_20 = arith.constant 0 : index
    %c0_21 = arith.constant 0 : index
    %46 = vector.load %arg9[%c0_19, %c0_20, %c0_21] : memref<4x2x128xf32, #tpu.memory_space<vmem>>, vector<1x2x128xf32>
    %47 = vector.shape_cast %46 : vector<1x2x128xf32> to vector<2x128xf32>
    %48 = arith.mulf %45, %44 : vector<2x128xf32>
    %49 = arith.addf %47, %48 : vector<2x128xf32>
    %c0_22 = arith.constant 0 : index
    %c0_23 = arith.constant 0 : index
    %c0_24 = arith.constant 0 : index
    %50 = vector.load %arg9[%c0_22, %c0_23, %c0_24] : memref<4x2x128xf32, #tpu.memory_space<vmem>>, vector<1x2x128xf32>
    %51 = vector.shape_cast %50 : vector<1x2x128xf32> to vector<2x128xf32>
    %52 = vector.shape_cast %49 : vector<2x128xf32> to vector<1x2x128xf32>
    tpu.vector_store %arg9[%c0_22, %c0_23, %c0_24], %52 {strides = array<i32>} : memref<4x2x128xf32, #tpu.memory_space<vmem>>, vector<1x2x128xf32>,
    %c0_25 = arith.constant 0 : index
    %c0_26 = arith.constant 0 : index
    %c0_27 = arith.constant 0 : index
    %53 = vector.load %arg10[%c0_25, %c0_26, %c0_27] : memref<4x2x128xf32, #tpu.memory_space<vmem>>, vector<1x2x128xf32>
    %54 = vector.shape_cast %53 : vector<1x2x128xf32> to vector<2x128xf32>
    %55 = arith.addf %54, %45 : vector<2x128xf32>
    %c0_28 = arith.constant 0 : index
    %c0_29 = arith.constant 0 : index
    %c0_30 = arith.constant 0 : index
    %56 = vector.load %arg10[%c0_28, %c0_29, %c0_30] : memref<4x2x128xf32, #tpu.memory_space<vmem>>, vector<1x2x128xf32>
    %57 = vector.shape_cast %56 : vector<1x2x128xf32> to vector<2x128xf32>
    %58 = vector.shape_cast %55 : vector<2x128xf32> to vector<1x2x128xf32>
    tpu.vector_store %arg10[%c0_28, %c0_29, %c0_30], %58 {strides = array<i32>} : memref<4x2x128xf32, #tpu.memory_space<vmem>>, vector<1x2x128xf32>,
    %c0_31 = arith.constant 0 : index
    %c0_32 = arith.constant 0 : index
    %c0_33 = arith.constant 0 : index
    %59 = vector.load %arg11[%c0_31, %c0_32, %c0_33] : memref<4x2x128xf32, #tpu.memory_space<vmem>>, vector<1x2x128xf32>
    %60 = vector.shape_cast %59 : vector<1x2x128xf32> to vector<2x128xf32>
    %61 = arith.addf %60, %44 : vector<2x128xf32>
    %c0_34 = arith.constant 0 : index
    %c0_35 = arith.constant 0 : index
    %c0_36 = arith.constant 0 : index
    %62 = vector.load %arg11[%c0_34, %c0_35, %c0_36] : memref<4x2x128xf32, #tpu.memory_space<vmem>>, vector<1x2x128xf32>
    %63 = vector.shape_cast %62 : vector<1x2x128xf32> to vector<2x128xf32>
    %64 = vector.shape_cast %61 : vector<2x128xf32> to vector<1x2x128xf32>
    tpu.vector_store %arg11[%c0_34, %c0_35, %c0_36], %64 {strides = array<i32>} : memref<4x2x128xf32, #tpu.memory_space<vmem>>, vector<1x2x128xf32>,
    %65 = arith.mulf %44, %4 : vector<2x128xf32>
    %c1_i32 = arith.constant 1 : i32
    %66 = vector.broadcast %c1_i32 : i32 to vector<2x128xi32>
    %67 = arith.cmpi eq, %12, %66 : vector<2x128xi32>
    %68 = arith.extui %67 : vector<2x128xi1> to vector<2x128xi32>
    %69 = arith.sitofp %68 : vector<2x128xi32> to vector<2x128xf32>
    %70 = arith.mulf %19, %40 : vector<2x128xf32>
    %c1_37 = arith.constant 1 : index
    %c0_38 = arith.constant 0 : index
    %c0_39 = arith.constant 0 : index
    %71 = vector.load %arg9[%c1_37, %c0_38, %c0_39] : memref<4x2x128xf32, #tpu.memory_space<vmem>>, vector<1x2x128xf32>
    %72 = vector.shape_cast %71 : vector<1x2x128xf32> to vector<2x128xf32>
    %73 = arith.mulf %70, %69 : vector<2x128xf32>
    %74 = arith.addf %72, %73 : vector<2x128xf32>
    %c1_40 = arith.constant 1 : index
    %c0_41 = arith.constant 0 : index
    %c0_42 = arith.constant 0 : index
    %75 = vector.load %arg9[%c1_40, %c0_41, %c0_42] : memref<4x2x128xf32, #tpu.memory_space<vmem>>, vector<1x2x128xf32>
    %76 = vector.shape_cast %75 : vector<1x2x128xf32> to vector<2x128xf32>
    %77 = vector.shape_cast %74 : vector<2x128xf32> to vector<1x2x128xf32>
    tpu.vector_store %arg9[%c1_40, %c0_41, %c0_42], %77 {strides = array<i32>} : memref<4x2x128xf32, #tpu.memory_space<vmem>>, vector<1x2x128xf32>,
    %c1_43 = arith.constant 1 : index
    %c0_44 = arith.constant 0 : index
    %c0_45 = arith.constant 0 : index
    %78 = vector.load %arg10[%c1_43, %c0_44, %c0_45] : memref<4x2x128xf32, #tpu.memory_space<vmem>>, vector<1x2x128xf32>
    %79 = vector.shape_cast %78 : vector<1x2x128xf32> to vector<2x128xf32>
    %80 = arith.addf %79, %70 : vector<2x128xf32>
    %c1_46 = arith.constant 1 : index
    %c0_47 = arith.constant 0 : index
    %c0_48 = arith.constant 0 : index
    %81 = vector.load %arg10[%c1_46, %c0_47, %c0_48] : memref<4x2x128xf32, #tpu.memory_space<vmem>>, vector<1x2x128xf32>
    %82 = vector.shape_cast %81 : vector<1x2x128xf32> to vector<2x128xf32>
    %83 = vector.shape_cast %80 : vector<2x128xf32> to vector<1x2x128xf32>
    tpu.vector_store %arg10[%c1_46, %c0_47, %c0_48], %83 {strides = array<i32>} : memref<4x2x128xf32, #tpu.memory_space<vmem>>, vector<1x2x128xf32>,
    %c1_49 = arith.constant 1 : index
    %c0_50 = arith.constant 0 : index
    %c0_51 = arith.constant 0 : index
    %84 = vector.load %arg11[%c1_49, %c0_50, %c0_51] : memref<4x2x128xf32, #tpu.memory_space<vmem>>, vector<1x2x128xf32>
    %85 = vector.shape_cast %84 : vector<1x2x128xf32> to vector<2x128xf32>
    %86 = arith.addf %85, %69 : vector<2x128xf32>
    %c1_52 = arith.constant 1 : index
    %c0_53 = arith.constant 0 : index
    %c0_54 = arith.constant 0 : index
    %87 = vector.load %arg11[%c1_52, %c0_53, %c0_54] : memref<4x2x128xf32, #tpu.memory_space<vmem>>, vector<1x2x128xf32>
    %88 = vector.shape_cast %87 : vector<1x2x128xf32> to vector<2x128xf32>
    %89 = vector.shape_cast %86 : vector<2x128xf32> to vector<1x2x128xf32>
    tpu.vector_store %arg11[%c1_52, %c0_53, %c0_54], %89 {strides = array<i32>} : memref<4x2x128xf32, #tpu.memory_space<vmem>>, vector<1x2x128xf32>,
    %90 = arith.mulf %69, %6 : vector<2x128xf32>
    %91 = arith.addf %65, %90 : vector<2x128xf32>
    %c2_i32 = arith.constant 2 : i32
    %92 = vector.broadcast %c2_i32 : i32 to vector<2x128xi32>
    %93 = arith.cmpi eq, %12, %92 : vector<2x128xi32>
    %94 = arith.extui %93 : vector<2x128xi1> to vector<2x128xi32>
    %95 = arith.sitofp %94 : vector<2x128xi32> to vector<2x128xf32>
    %96 = arith.mulf %22, %40 : vector<2x128xf32>
    %c2_55 = arith.constant 2 : index
    %c0_56 = arith.constant 0 : index
    %c0_57 = arith.constant 0 : index
    %97 = vector.load %arg9[%c2_55, %c0_56, %c0_57] : memref<4x2x128xf32, #tpu.memory_space<vmem>>, vector<1x2x128xf32>
    %98 = vector.shape_cast %97 : vector<1x2x128xf32> to vector<2x128xf32>
    %99 = arith.mulf %96, %95 : vector<2x128xf32>
    %100 = arith.addf %98, %99 : vector<2x128xf32>
    %c2_58 = arith.constant 2 : index
    %c0_59 = arith.constant 0 : index
    %c0_60 = arith.constant 0 : index
    %101 = vector.load %arg9[%c2_58, %c0_59, %c0_60] : memref<4x2x128xf32, #tpu.memory_space<vmem>>, vector<1x2x128xf32>
    %102 = vector.shape_cast %101 : vector<1x2x128xf32> to vector<2x128xf32>
    %103 = vector.shape_cast %100 : vector<2x128xf32> to vector<1x2x128xf32>
    tpu.vector_store %arg9[%c2_58, %c0_59, %c0_60], %103 {strides = array<i32>} : memref<4x2x128xf32, #tpu.memory_space<vmem>>, vector<1x2x128xf32>,
    %c2_61 = arith.constant 2 : index
    %c0_62 = arith.constant 0 : index
    %c0_63 = arith.constant 0 : index
    %104 = vector.load %arg10[%c2_61, %c0_62, %c0_63] : memref<4x2x128xf32, #tpu.memory_space<vmem>>, vector<1x2x128xf32>
    %105 = vector.shape_cast %104 : vector<1x2x128xf32> to vector<2x128xf32>
    %106 = arith.addf %105, %96 : vector<2x128xf32>
    %c2_64 = arith.constant 2 : index
    %c0_65 = arith.constant 0 : index
    %c0_66 = arith.constant 0 : index
    %107 = vector.load %arg10[%c2_64, %c0_65, %c0_66] : memref<4x2x128xf32, #tpu.memory_space<vmem>>, vector<1x2x128xf32>
    %108 = vector.shape_cast %107 : vector<1x2x128xf32> to vector<2x128xf32>
    %109 = vector.shape_cast %106 : vector<2x128xf32> to vector<1x2x128xf32>
    tpu.vector_store %arg10[%c2_64, %c0_65, %c0_66], %109 {strides = array<i32>} : memref<4x2x128xf32, #tpu.memory_space<vmem>>, vector<1x2x128xf32>,
    %c2_67 = arith.constant 2 : index
    %c0_68 = arith.constant 0 : index
    %c0_69 = arith.constant 0 : index
    %110 = vector.load %arg11[%c2_67, %c0_68, %c0_69] : memref<4x2x128xf32, #tpu.memory_space<vmem>>, vector<1x2x128xf32>
    %111 = vector.shape_cast %110 : vector<1x2x128xf32> to vector<2x128xf32>
    %112 = arith.addf %111, %95 : vector<2x128xf32>
    %c2_70 = arith.constant 2 : index
    %c0_71 = arith.constant 0 : index
    %c0_72 = arith.constant 0 : index
    %113 = vector.load %arg11[%c2_70, %c0_71, %c0_72] : memref<4x2x128xf32, #tpu.memory_space<vmem>>, vector<1x2x128xf32>
    %114 = vector.shape_cast %113 : vector<1x2x128xf32> to vector<2x128xf32>
    %115 = vector.shape_cast %112 : vector<2x128xf32> to vector<1x2x128xf32>
    tpu.vector_store %arg11[%c2_70, %c0_71, %c0_72], %115 {strides = array<i32>} : memref<4x2x128xf32, #tpu.memory_space<vmem>>, vector<1x2x128xf32>,
    %116 = arith.mulf %95, %8 : vector<2x128xf32>
    %117 = arith.addf %91, %116 : vector<2x128xf32>
    %c3_i32 = arith.constant 3 : i32
    %118 = vector.broadcast %c3_i32 : i32 to vector<2x128xi32>
    %119 = arith.cmpi eq, %12, %118 : vector<2x128xi32>
    %120 = arith.extui %119 : vector<2x128xi1> to vector<2x128xi32>
    %121 = arith.sitofp %120 : vector<2x128xi32> to vector<2x128xf32>
    %122 = arith.mulf %25, %40 : vector<2x128xf32>
    %c3_73 = arith.constant 3 : index
    %c0_74 = arith.constant 0 : index
    %c0_75 = arith.constant 0 : index
    %123 = vector.load %arg9[%c3_73, %c0_74, %c0_75] : memref<4x2x128xf32, #tpu.memory_space<vmem>>, vector<1x2x128xf32>
    %124 = vector.shape_cast %123 : vector<1x2x128xf32> to vector<2x128xf32>
    %125 = arith.mulf %122, %121 : vector<2x128xf32>
    %126 = arith.addf %124, %125 : vector<2x128xf32>
    %c3_76 = arith.constant 3 : index
    %c0_77 = arith.constant 0 : index
    %c0_78 = arith.constant 0 : index
    %127 = vector.load %arg9[%c3_76, %c0_77, %c0_78] : memref<4x2x128xf32, #tpu.memory_space<vmem>>, vector<1x2x128xf32>
    %128 = vector.shape_cast %127 : vector<1x2x128xf32> to vector<2x128xf32>
    %129 = vector.shape_cast %126 : vector<2x128xf32> to vector<1x2x128xf32>
    tpu.vector_store %arg9[%c3_76, %c0_77, %c0_78], %129 {strides = array<i32>} : memref<4x2x128xf32, #tpu.memory_space<vmem>>, vector<1x2x128xf32>,
    %c3_79 = arith.constant 3 : index
    %c0_80 = arith.constant 0 : index
    %c0_81 = arith.constant 0 : index
    %130 = vector.load %arg10[%c3_79, %c0_80, %c0_81] : memref<4x2x128xf32, #tpu.memory_space<vmem>>, vector<1x2x128xf32>
    %131 = vector.shape_cast %130 : vector<1x2x128xf32> to vector<2x128xf32>
    %132 = arith.addf %131, %122 : vector<2x128xf32>
    %c3_82 = arith.constant 3 : index
    %c0_83 = arith.constant 0 : index
    %c0_84 = arith.constant 0 : index
    %133 = vector.load %arg10[%c3_82, %c0_83, %c0_84] : memref<4x2x128xf32, #tpu.memory_space<vmem>>, vector<1x2x128xf32>
    %134 = vector.shape_cast %133 : vector<1x2x128xf32> to vector<2x128xf32>
    %135 = vector.shape_cast %132 : vector<2x128xf32> to vector<1x2x128xf32>
    tpu.vector_store %arg10[%c3_82, %c0_83, %c0_84], %135 {strides = array<i32>} : memref<4x2x128xf32, #tpu.memory_space<vmem>>, vector<1x2x128xf32>,
    %c3_85 = arith.constant 3 : index
    %c0_86 = arith.constant 0 : index
    %c0_87 = arith.constant 0 : index
    %136 = vector.load %arg11[%c3_85, %c0_86, %c0_87] : memref<4x2x128xf32, #tpu.memory_space<vmem>>, vector<1x2x128xf32>
    %137 = vector.shape_cast %136 : vector<1x2x128xf32> to vector<2x128xf32>
    %138 = arith.addf %137, %121 : vector<2x128xf32>
    %c3_88 = arith.constant 3 : index
    %c0_89 = arith.constant 0 : index
    %c0_90 = arith.constant 0 : index
    %139 = vector.load %arg11[%c3_88, %c0_89, %c0_90] : memref<4x2x128xf32, #tpu.memory_space<vmem>>, vector<1x2x128xf32>
    %140 = vector.shape_cast %139 : vector<1x2x128xf32> to vector<2x128xf32>
    %141 = vector.shape_cast %138 : vector<2x128xf32> to vector<1x2x128xf32>
    tpu.vector_store %arg11[%c3_88, %c0_89, %c0_90], %141 {strides = array<i32>} : memref<4x2x128xf32, #tpu.memory_space<vmem>>, vector<1x2x128xf32>,
    %142 = arith.mulf %121, %10 : vector<2x128xf32>
    %143 = arith.addf %117, %142 : vector<2x128xf32>
    %c0_91 = arith.constant 0 : index
    %c0_92 = arith.constant 0 : index
    %144 = vector.load %arg12[%c0_91, %c0_92] : memref<2x128xf32, #tpu.memory_space<vmem>>, vector<2x128xf32>
    %145 = arith.addf %15, %32 : vector<2x128xf32>
    %146 = arith.mulf %39, %145 : vector<2x128xf32>
    %147 = arith.subf %146, %143 : vector<2x128xf32>
    %148 = arith.addf %144, %147 : vector<2x128xf32>
    %c0_93 = arith.constant 0 : index
    %c0_94 = arith.constant 0 : index
    %149 = vector.load %arg12[%c0_93, %c0_94] : memref<2x128xf32, #tpu.memory_space<vmem>>, vector<2x128xf32>
    tpu.vector_store %arg12[%c0_93, %c0_94], %148 {strides = array<i32>} : memref<2x128xf32, #tpu.memory_space<vmem>>, vector<2x128xf32>,
    %c0_i32_95 = arith.constant 0 : i32
    %150 = arith.cmpi eq, %arg2, %c0_i32_95 : i32
    %151 = arith.extui %150 : i1 to i32
    %c0_i32_96 = arith.constant 0 : i32
    %152 = arith.cmpi ne, %151, %c0_i32_96 : i32
    scf.if %152 {
      %c0_97 = arith.constant 0 : index
      %c0_98 = arith.constant 0 : index
      %c0_99 = arith.constant 0 : index
      %153 = vector.load %arg9[%c0_97, %c0_98, %c0_99] : memref<4x2x128xf32, #tpu.memory_space<vmem>>, vector<4x2x128xf32>
      %cst_100 = arith.constant dense<0.000000e+00> : vector<4x2xf32>
      %154 = vector.multi_reduction <add>, %153, %cst_100 [2] : vector<4x2x128xf32> to vector<4x2xf32>
      %cst_101 = arith.constant dense<0.000000e+00> : vector<4xf32>
      %155 = vector.multi_reduction <add>, %154, %cst_101 [1] : vector<4x2xf32> to vector<4xf32>
      %156 = vector.shape_cast %155 : vector<4xf32> to vector<4x1xf32>
      %c0_102 = arith.constant 0 : index
      %c0_103 = arith.constant 0 : index
      %c0_104 = arith.constant 0 : index
      %c0_105 = arith.constant 0 : index
      %157 = vector.load %arg5[%c0_102, %c0_103, %c0_104, %c0_105] : memref<1x1x4x1xf32, #tpu.memory_space<vmem>>, vector<1x1x4x1xf32>
      %158 = vector.shape_cast %157 : vector<1x1x4x1xf32> to vector<4x1xf32>
      %159 = vector.shape_cast %156 : vector<4x1xf32> to vector<1x1x4x1xf32>
      tpu.vector_store %arg5[%c0_102, %c0_103, %c0_104, %c0_105], %159 {strides = array<i32>} : memref<1x1x4x1xf32, #tpu.memory_space<vmem>>, vector<1x1x4x1xf32>,
      %c0_106 = arith.constant 0 : index
      %c0_107 = arith.constant 0 : index
      %c0_108 = arith.constant 0 : index
      %160 = vector.load %arg10[%c0_106, %c0_107, %c0_108] : memref<4x2x128xf32, #tpu.memory_space<vmem>>, vector<4x2x128xf32>
      %cst_109 = arith.constant dense<0.000000e+00> : vector<4x2xf32>
      %161 = vector.multi_reduction <add>, %160, %cst_109 [2] : vector<4x2x128xf32> to vector<4x2xf32>
      %cst_110 = arith.constant dense<0.000000e+00> : vector<4xf32>
      %162 = vector.multi_reduction <add>, %161, %cst_110 [1] : vector<4x2xf32> to vector<4xf32>
      %163 = vector.shape_cast %162 : vector<4xf32> to vector<4x1xf32>
      %c0_111 = arith.constant 0 : index
      %c0_112 = arith.constant 0 : index
      %c0_113 = arith.constant 0 : index
      %c0_114 = arith.constant 0 : index
      %164 = vector.load %arg6[%c0_111, %c0_112, %c0_113, %c0_114] : memref<1x1x4x1xf32, #tpu.memory_space<vmem>>, vector<1x1x4x1xf32>
      %165 = vector.shape_cast %164 : vector<1x1x4x1xf32> to vector<4x1xf32>
      %166 = vector.shape_cast %163 : vector<4x1xf32> to vector<1x1x4x1xf32>
      tpu.vector_store %arg6[%c0_111, %c0_112, %c0_113, %c0_114], %166 {strides = array<i32>} : memref<1x1x4x1xf32, #tpu.memory_space<vmem>>, vector<1x1x4x1xf32>,
      %c0_115 = arith.constant 0 : index
      %c0_116 = arith.constant 0 : index
      %c0_117 = arith.constant 0 : index
      %167 = vector.load %arg11[%c0_115, %c0_116, %c0_117] : memref<4x2x128xf32, #tpu.memory_space<vmem>>, vector<4x2x128xf32>
      %cst_118 = arith.constant dense<0.000000e+00> : vector<4x2xf32>
      %168 = vector.multi_reduction <add>, %167, %cst_118 [2] : vector<4x2x128xf32> to vector<4x2xf32>
      %cst_119 = arith.constant dense<0.000000e+00> : vector<4xf32>
      %169 = vector.multi_reduction <add>, %168, %cst_119 [1] : vector<4x2xf32> to vector<4xf32>
      %170 = vector.shape_cast %169 : vector<4xf32> to vector<4x1xf32>
      %c0_120 = arith.constant 0 : index
      %c0_121 = arith.constant 0 : index
      %c0_122 = arith.constant 0 : index
      %c0_123 = arith.constant 0 : index
      %171 = vector.load %arg7[%c0_120, %c0_121, %c0_122, %c0_123] : memref<1x1x4x1xf32, #tpu.memory_space<vmem>>, vector<1x1x4x1xf32>
      %172 = vector.shape_cast %171 : vector<1x1x4x1xf32> to vector<4x1xf32>
      %173 = vector.shape_cast %170 : vector<4x1xf32> to vector<1x1x4x1xf32>
      tpu.vector_store %arg7[%c0_120, %c0_121, %c0_122, %c0_123], %173 {strides = array<i32>} : memref<1x1x4x1xf32, #tpu.memory_space<vmem>>, vector<1x1x4x1xf32>,
      %c0_124 = arith.constant 0 : index
      %c0_125 = arith.constant 0 : index
      %174 = vector.load %arg12[%c0_124, %c0_125] : memref<2x128xf32, #tpu.memory_space<vmem>>, vector<2x128xf32>
      %cst_126 = arith.constant dense<0.000000e+00> : vector<2xf32>
      %175 = vector.multi_reduction <add>, %174, %cst_126 [1] : vector<2x128xf32> to vector<2xf32>
      %176 = vector.shape_cast %175 : vector<2xf32> to vector<2x1xf32>
      %cst_127 = arith.constant dense<0.000000e+00> : vector<1xf32>
      %177 = vector.multi_reduction <add>, %176, %cst_127 [0] : vector<2x1xf32> to vector<1xf32>
      %178 = vector.shape_cast %177 : vector<1xf32> to vector<1x1xf32>
      %c0_128 = arith.constant 0 : index
      %c0_129 = arith.constant 0 : index
      %c0_130 = arith.constant 0 : index
      %c0_131 = arith.constant 0 : index
      %179 = vector.load %arg8[%c0_128, %c0_129, %c0_130, %c0_131] : memref<1x1x1x1xf32, #tpu.memory_space<vmem>>, vector<1x1x1x1xf32>
      %180 = vector.shape_cast %179 : vector<1x1x1x1xf32> to vector<1x1xf32>
      %181 = vector.shape_cast %178 : vector<1x1xf32> to vector<1x1x1x1xf32>
      tpu.vector_store %arg8[%c0_128, %c0_129, %c0_130, %c0_131], %181 {strides = array<i32>} : memref<1x1x1x1xf32, #tpu.memory_space<vmem>>, vector<1x1x1x1xf32>,
    } else {
    }
    return
  }
  func.func @transform_0(%arg0: i32, %arg1: i32, %arg2: i32) -> (i32, i32, i32, i32) {
    %c1_i32 = arith.constant 1 : i32
    %0 = arith.muli %arg1, %c1_i32 : i32
    %1 = arith.addi %0, %arg2 : i32
    %c0_i32 = arith.constant 0 : i32
    %c0_i32_0 = arith.constant 0 : i32
    %c0_i32_1 = arith.constant 0 : i32
    return %arg0, %c0_i32, %1, %c0_i32_0 : i32, i32, i32, i32
  }
  func.func @transform_1(%arg0: i32, %arg1: i32, %arg2: i32) -> (i32, i32, i32, i32) {
    %c1_i32 = arith.constant 1 : i32
    %0 = arith.muli %arg1, %c1_i32 : i32
    %1 = arith.addi %0, %arg2 : i32
    %c0_i32 = arith.constant 0 : i32
    %c0_i32_0 = arith.constant 0 : i32
    %c0_i32_1 = arith.constant 0 : i32
    return %arg0, %c0_i32, %1, %c0_i32_0 : i32, i32, i32, i32
  }
  func.func @transform_2(%arg0: i32, %arg1: i32, %arg2: i32) -> (i32, i32, i32, i32) {
    %c0_i32 = arith.constant 0 : i32
    %c0_i32_0 = arith.constant 0 : i32
    %c0_i32_1 = arith.constant 0 : i32
    return %arg0, %arg1, %c0_i32, %c0_i32_0 : i32, i32, i32, i32
  }
  func.func @transform_3(%arg0: i32, %arg1: i32, %arg2: i32) -> (i32, i32, i32, i32) {
    %c0_i32 = arith.constant 0 : i32
    %c0_i32_0 = arith.constant 0 : i32
    %c0_i32_1 = arith.constant 0 : i32
    return %arg0, %arg1, %c0_i32, %c0_i32_0 : i32, i32, i32, i32
  }
  func.func @transform_4(%arg0: i32, %arg1: i32, %arg2: i32) -> (i32, i32, i32, i32) {
    %c0_i32 = arith.constant 0 : i32
    %c0_i32_0 = arith.constant 0 : i32
    %c0_i32_1 = arith.constant 0 : i32
    return %arg0, %arg1, %c0_i32, %c0_i32_0 : i32, i32, i32, i32
  }
  func.func @transform_5(%arg0: i32, %arg1: i32, %arg2: i32) -> (i32, i32, i32, i32) {
    %c0_i32 = arith.constant 0 : i32
    %c0_i32_0 = arith.constant 0 : i32
    %c0_i32_1 = arith.constant 0 : i32
    return %arg0, %arg1, %c0_i32, %c0_i32_0 : i32, i32, i32, i32
  }
}

</mosaic_0001>

<llo_original>
// kernel: tpu_custom_call.1
$region0: #{tpu_custom_call.1}
  #allocation0 [shape = 'u32[]', space=smem, size = 0x4, offset = 0x4, fixed_abs, tag = 'smem constant byte address 0x4 - core index']
  #allocation1 [shape = 'u32[144,128]{1,0:T(1,128)}', space=vmem, size = 0x12000, scoped, tag = 'internal scratch']
  #allocation2 [shape = 'f32[4,2,128]{2,1,0:T(2,128)}', space=vmem, size = 0x1000, scoped, tag = 'scratch operand']
  #allocation3 [shape = 'f32[4,2,128]{2,1,0:T(2,128)}', space=vmem, size = 0x1000, scoped, tag = 'scratch operand']
  #allocation4 [shape = 'f32[4,2,128]{2,1,0:T(2,128)}', space=vmem, size = 0x1000, scoped, tag = 'scratch operand']
  #allocation5 [shape = 'f32[2,128]{1,0:T(2,128)}', space=vmem, size = 0x400, scoped, tag = 'scratch operand']
  %s0 = inlined_call_operand.hbm [shape: f32[2,4,2,128], index: 0, kind: input, shape index: {}]
  %s1 = inlined_call_operand.hbm [shape: s32[2,1,2,128], index: 1, kind: input, shape index: {}]
  %s2 = inlined_call_operand.vmem [shape: f32[2,1,4,1], index: 2, kind: output, shape index: {0}]
  %s3 = inlined_call_operand.vmem [shape: f32[2,1,4,1], index: 3, kind: output, shape index: {1}]
  %s4 = inlined_call_operand.vmem [shape: f32[2,1,4,1], index: 4, kind: output, shape index: {2}]
  %s5 = inlined_call_operand.vmem [shape: f32[2,1,1,1], index: 5, kind: output, shape index: {3}]
  %6 = xla_tuple %s2, %s3, %s4, %s5
  %s7 = sld [smem:[#allocation0]]
  $region81: #{tpu_custom_call.1} parent=0
    _
  %s9 = ssub.s32 1, %s7
  %s10 = scalar_select 0, %s9, %s7
  $region1: #{tpu_custom_call.1} parent=0
    #allocation6 [shape = 'u8[8192]{0}', space=vmem, size = 0x2000, scoped, tag = 'input window, operand 0']
    #allocation7 [shape = 's32[2]{0}', space=sflag, size = 0x8, scoped, tag = 'scoped memory for tpu_custom_call.1']
    #allocation8 [shape = 'u8[2048]{0}', space=vmem, size = 0x800, scoped, tag = 'input window, operand 1']
    #allocation9 [shape = 's32[2]{0}', space=sflag, size = 0x8, scoped, tag = 'scoped memory for tpu_custom_call.1']
    %11 = vsyncpa [#allocation7], 0
    %s12 = scalar_lea.sflag [#allocation7], 1
    %13 = vsyncpa %s12, 0
    %14 = vsyncpa [#allocation9], 0
    %s15 = scalar_lea.sflag [#allocation9], 1
    %16 = vsyncpa %s15, 0
    loop: start=0, step=1, limit=4
    $region2: #{tpu_custom_call.1} parent=1 // loop_pre_header
      _
    $region3: #{tpu_custom_call.1} parent=1 // loop_header
      %s18 = sphi 0, %s22
      %p19 = scmp.ge.s32.totalorder %s18, 4
      %s25 = sphi 0, %s44
      %s26 = sphi 0, %s40
      %s27 = sphi 0, %s36
      %s28 = sphi 0, %s25
      %s29 = sphi 0, %s26
      %s30 = sphi 0, %s27
      %s31 = sphi 0, %s28
      %s32 = sphi 0, %s29
      %s33 = sphi 0, %s30
      %s51 = sphi 0, %s53
      %s54 = sphi 0, %s51
      %s55 = sphi 0, %s54
      %s71 = sphi 0, %s55
      %s81 = sphi 0, %s83
      %s84 = sphi 0, %s81
      %s85 = sphi 0, %s84
      %s101 = sphi 0, %s85
      %s109 = sphi 0, %s111
      %s112 = sphi 0, %s109
      %s113 = sphi 0, %s112
      %s129 = sphi 0, %s113
      %s137 = sphi 0, %s139
      %s140 = sphi 0, %s137
      %s141 = sphi 0, %s140
      %s157 = sphi 0, %s141
      %s165 = sphi 0, %s167
      %s168 = sphi 0, %s165
      %s169 = sphi 0, %s168
      %s185 = sphi 0, %s169
      %s193 = sphi 0, %s195
      %s196 = sphi 0, %s193
      %s197 = sphi 0, %s196
      %s213 = sphi 0, %s197
    $region4: #{tpu_custom_call.1} parent=1 // loop_header_branch
      %21 = sbr.rel (%p19) target = $region8
    $region5: #{tpu_custom_call.1} parent=1 // loop_body
      %s23 = ssub.s32 %s18, 1
      %s24 = ssub.s32 %s18, 2
      %s34 = sadd.s32 1, %s27
      %p35 = scmp.ge.s32.totalorder %s34, 1
      %s36 = scalar_select %p35, 0, %s34
      %s37 = sadd.s32 1, %s26
      %s38 = scalar_select %p35, %s37, %s26
      %p39 = scmp.ge.s32.totalorder %s38, 1
      %s40 = scalar_select %p39, 0, %s38
      %s41 = sadd.s32 1, %s25
      %s42 = scalar_select %p39, %s41, %s25
      %p43 = scmp.ge.s32.totalorder %s42, 2
      %s44 = scalar_select %p43, 0, %s42
      %s45 = sadd.s32 %s26, %s27
      %s46 = sadd.s32 %s40, %s36
      %s47 = ssub.s32 %s25, %s44
      %s48 = ssub.s32 %s45, %s46
      %s49 = sor.u32 %s47, %s48
      %p50 = scmp.eq.s32.totalorder %s49, 0
      %s52 = sadd.s32 %s51, 1
      %s53 = scalar_select %p50, %s51, %s52
      %p56 = pneg %p50
      %p57 = scmp.eq.s32.totalorder %s18, 1
      %p58 = por %p56, %p57
      %p59 = scmp.ne.s32.totalorder %s51, %s54
      %p60 = scmp.eq.s32.totalorder %s18, 0
      %p61 = por %p59, %p60
      %p62 = scmp.ne.s32.totalorder %s51, %s54
      %p63 = scmp.eq.s32.totalorder %s23, 1
      %p64 = por %p62, %p63
      %p65 = scmp.ne.s32.totalorder %s54, %s55
      %p66 = scmp.eq.s32.totalorder %s23, 0
      %p67 = por %p65, %p66
      %p68 = scmp.ne.s32.totalorder %s54, %s55
      %p69 = scmp.eq.s32.totalorder %s24, 1
      %p70 = por %p68, %p69
      %p72 = scmp.ne.s32.totalorder %s55, %s71
      %p73 = scmp.eq.s32.totalorder %s24, 0
      %p74 = por %p72, %p73
      %s75 = sadd.s32 %s26, %s27
      %s76 = sadd.s32 %s40, %s36
      %s77 = ssub.s32 %s25, %s44
      %s78 = ssub.s32 %s75, %s76
      %s79 = sor.u32 %s77, %s78
      %p80 = scmp.eq.s32.totalorder %s79, 0
      %s82 = sadd.s32 %s81, 1
      %s83 = scalar_select %p80, %s81, %s82
      %p86 = pneg %p80
      %p87 = scmp.eq.s32.totalorder %s18, 1
      %p88 = por %p86, %p87
      %p89 = scmp.ne.s32.totalorder %s81, %s84
      %p90 = scmp.eq.s32.totalorder %s18, 0
      %p91 = por %p89, %p90
      %p92 = scmp.ne.s32.totalorder %s81, %s84
      %p93 = scmp.eq.s32.totalorder %s23, 1
      %p94 = por %p92, %p93
      %p95 = scmp.ne.s32.totalorder %s84, %s85
      %p96 = scmp.eq.s32.totalorder %s23, 0
      %p97 = por %p95, %p96
      %p98 = scmp.ne.s32.totalorder %s84, %s85
      %p99 = scmp.eq.s32.totalorder %s24, 1
      %p100 = por %p98, %p99
      %p102 = scmp.ne.s32.totalorder %s85, %s101
      %p103 = scmp.eq.s32.totalorder %s24, 0
      %p104 = por %p102, %p103
      %s105 = ssub.s32 %s25, %s44
      %s106 = ssub.s32 %s26, %s40
      %s107 = sor.u32 %s105, %s106
      %p108 = scmp.eq.s32.totalorder %s107, 0
      %s110 = sadd.s32 %s109, 1
      %s111 = scalar_select %p108, %s109, %s110
      %p114 = pneg %p108
      %p115 = scmp.eq.s32.totalorder %s18, 1
      %p116 = por %p114, %p115
      %p117 = scmp.ne.s32.totalorder %s109, %s112
      %p118 = scmp.eq.s32.totalorder %s18, 0
      %p119 = por %p117, %p118
      %p120 = scmp.ne.s32.totalorder %s109, %s112
      %p121 = scmp.eq.s32.totalorder %s23, 1
      %p122 = por %p120, %p121
      %p123 = scmp.ne.s32.totalorder %s112, %s113
      %p124 = scmp.eq.s32.totalorder %s23, 0
      %p125 = por %p123, %p124
      %p126 = scmp.ne.s32.totalorder %s112, %s113
      %p127 = scmp.eq.s32.totalorder %s24, 1
      %p128 = por %p126, %p127
      %p130 = scmp.ne.s32.totalorder %s113, %s129
      %p131 = scmp.eq.s32.totalorder %s24, 0
      %p132 = por %p130, %p131
      %s133 = ssub.s32 %s25, %s44
      %s134 = ssub.s32 %s26, %s40
      %s135 = sor.u32 %s133, %s134
      %p136 = scmp.eq.s32.totalorder %s135, 0
      %s138 = sadd.s32 %s137, 1
      %s139 = scalar_select %p136, %s137, %s138
      %p142 = pneg %p136
      %p143 = scmp.eq.s32.totalorder %s18, 1
      %p144 = por %p142, %p143
      %p145 = scmp.ne.s32.totalorder %s137, %s140
      %p146 = scmp.eq.s32.totalorder %s18, 0
      %p147 = por %p145, %p146
      %p148 = scmp.ne.s32.totalorder %s137, %s140
      %p149 = scmp.eq.s32.totalorder %s23, 1
      %p150 = por %p148, %p149
      %p151 = scmp.ne.s32.totalorder %s140, %s141
      %p152 = scmp.eq.s32.totalorder %s23, 0
      %p153 = por %p151, %p152
      %p154 = scmp.ne.s32.totalorder %s140, %s141
      %p155 = scmp.eq.s32.totalorder %s24, 1
      %p156 = por %p154, %p155
      %p158 = scmp.ne.s32.totalorder %s141, %s157
      %p159 = scmp.eq.s32.totalorder %s24, 0
      %p160 = por %p158, %p159
      %s161 = ssub.s32 %s25, %s44
      %s162 = ssub.s32 %s26, %s40
      %s163 = sor.u32 %s161, %s162
      %p164 = scmp.eq.s32.totalorder %s163, 0
      %s166 = sadd.s32 %s165, 1
      %s167 = scalar_select %p164, %s165, %s166
      %p170 = pneg %p164
      %p171 = scmp.eq.s32.totalorder %s18, 1
      %p172 = por %p170, %p171
      %p173 = scmp.ne.s32.totalorder %s165, %s168
      %p174 = scmp.eq.s32.totalorder %s18, 0
      %p175 = por %p173, %p174
      %p176 = scmp.ne.s32.totalorder %s165, %s168
      %p177 = scmp.eq.s32.totalorder %s23, 1
      %p178 = por %p176, %p177
      %p179 = scmp.ne.s32.totalorder %s168, %s169
      %p180 = scmp.eq.s32.totalorder %s23, 0
      %p181 = por %p179, %p180
      %p182 = scmp.ne.s32.totalorder %s168, %s169
      %p183 = scmp.eq.s32.totalorder %s24, 1
      %p184 = por %p182, %p183
      %p186 = scmp.ne.s32.totalorder %s169, %s185
      %p187 = scmp.eq.s32.totalorder %s24, 0
      %p188 = por %p186, %p187
      %s189 = ssub.s32 %s25, %s44
      %s190 = ssub.s32 %s26, %s40
      %s191 = sor.u32 %s189, %s190
      %p192 = scmp.eq.s32.totalorder %s191, 0
      %s194 = sadd.s32 %s193, 1
      %s195 = scalar_select %p192, %s193, %s194
      %p198 = pneg %p192
      %p199 = scmp.eq.s32.totalorder %s18, 1
      %p200 = por %p198, %p199
      %p201 = scmp.ne.s32.totalorder %s193, %s196
      %p202 = scmp.eq.s32.totalorder %s18, 0
      %p203 = por %p201, %p202
      %p204 = scmp.ne.s32.totalorder %s193, %s196
      %p205 = scmp.eq.s32.totalorder %s23, 1
      %p206 = por %p204, %p205
      %p207 = scmp.ne.s32.totalorder %s196, %s197
      %p208 = scmp.eq.s32.totalorder %s23, 0
      %p209 = por %p207, %p208
      %p210 = scmp.ne.s32.totalorder %s196, %s197
      %p211 = scmp.eq.s32.totalorder %s24, 1
      %p212 = por %p210, %p211
      %p214 = scmp.ne.s32.totalorder %s197, %s213
      %p215 = scmp.eq.s32.totalorder %s24, 0
      %p216 = por %p214, %p215
      %p217 = scmp.le.s32.totalorder 1, %s18
      %p218 = scmp.lt.s32.totalorder %s18, 3
      %p219 = pnand %p217, %p218
      %p220 = pneg %p219
      // Predicated region
      $region9: #{tpu_custom_call.1} parent=5 // pred_check
        _
      $region10: #{tpu_custom_call.1} parent=5 // pred_check_branch
        %222 = sbr.rel (%p219) target = $region12
      $region11: #{tpu_custom_call.1} parent=5 // pred_region
        %s223 = ssub.s32 %s18, 1
      $region12: #{tpu_custom_call.1} parent=5 // pred_fallthru
        _
      %p224 = scmp.lt.s32.totalorder %s18, 2
      // Predicated region
      $region13: #{tpu_custom_call.1} parent=5 // pred_check
        %p225 = pneg %p224
      $region14: #{tpu_custom_call.1} parent=5 // pred_check_branch
        %227 = sbr.rel (%p225) target = $region16
      $region15: #{tpu_custom_call.1} parent=5 // pred_region
        // Predicated region
        $region17: #{tpu_custom_call.1} parent=15 // pred_check
          %p228 = pneg %p61
        $region18: #{tpu_custom_call.1} parent=15 // pred_check_branch
          %230 = sbr.rel (%p228) target = $region20
        $region19: #{tpu_custom_call.1} parent=15 // pred_region
          %s231 = sand.u32 %s51, 1
          %s232 = scalar_lea.sflag [#allocation7], %s231
          %s233 = sand.u32 %s51, 1
          %s234 = smul.addr %s233, 8
          %s235 = scalar_lea.vmem [#allocation6], %s234
          %s236 = sadd.s32 %s26, %s27
          %s238 = ssub.s32 128, 128
          %239 = vsyncadd %s232, %s238
          %s240 = smul.addr %s25, 4
          %s241 = sadd.s32 %s236, %s240
          %s242 = smul.addr %s241, 32
          %s243 = scalar_lea.hbm %s0, %s242
          %s244 = sshll.u32 %s235, 4
          %s245 = int_to_ptr.vmem [resolvable:$true] %s244
          %250 = dma.hbm_to_vmem [thread:$0]  %s243, 128, %s245, %s232, 32, 32, 2
        $region20: #{tpu_custom_call.1} parent=15 // pred_fallthru
          _
        // Predicated region
        $region21: #{tpu_custom_call.1} parent=15 // pred_check
          %p251 = pneg %p91
        $region22: #{tpu_custom_call.1} parent=15 // pred_check_branch
          %253 = sbr.rel (%p251) target = $region24
        $region23: #{tpu_custom_call.1} parent=15 // pred_region
          %s254 = sand.u32 %s81, 1
          %s255 = scalar_lea.sflag [#allocation9], %s254
          %s256 = sand.u32 %s81, 1
          %s257 = smul.addr %s256, 2
          %s258 = scalar_lea.vmem [#allocation8], %s257
          %s259 = sadd.s32 %s26, %s27
          %s261 = ssub.s32 32, 32
          %262 = vsyncadd %s255, %s261
          %s263 = sadd.s32 %s259, %s25
          %s264 = smul.addr %s263, 32
          %s265 = scalar_lea.hbm %s1, %s264
          %s267 = sshll.u32 %s258, 4
          %s268 = int_to_ptr.vmem [resolvable:$true] %s267
          %270 = dma.hbm_to_vmem [thread:$0]  %s265, 32, %s268, %s255
        $region24: #{tpu_custom_call.1} parent=15 // pred_fallthru
          _
      $region16: #{tpu_custom_call.1} parent=5 // pred_fallthru
        _
      %p271 = scmp.le.s32.totalorder 1, %s18
      %p272 = scmp.lt.s32.totalorder %s18, 3
      %p273 = pnand %p271, %p272
      %p274 = pneg %p273
      // Predicated region
      $region25: #{tpu_custom_call.1} parent=5 // pred_check
        _
      $region26: #{tpu_custom_call.1} parent=5 // pred_check_branch
        %276 = sbr.rel (%p273) target = $region28
      $region27: #{tpu_custom_call.1} parent=5 // pred_region
        %s277 = ssub.s32 %s18, 1
        %s278 = sand.u32 %s54, 1
        %s279 = scalar_lea.sflag [#allocation7], %s278
        %s280 = sand.u32 %s54, 1
        %s281 = smul.addr %s280, 8
        %s282 = scalar_lea.vmem [#allocation6], %s281
        // Predicated region
        $region29: #{tpu_custom_call.1} parent=27 // pred_check
          %p283 = pneg %p67
        $region30: #{tpu_custom_call.1} parent=27 // pred_check_branch
          %285 = sbr.rel (%p283) target = $region32
        $region31: #{tpu_custom_call.1} parent=27 // pred_region
          %286 = dma.done %s279, 128
        $region32: #{tpu_custom_call.1} parent=27 // pred_fallthru
          _
        %s287 = sand.u32 %s84, 1
        %s288 = scalar_lea.sflag [#allocation9], %s287
        %s289 = sand.u32 %s84, 1
        %s290 = smul.addr %s289, 2
        %s291 = scalar_lea.vmem [#allocation8], %s290
        // Predicated region
        $region33: #{tpu_custom_call.1} parent=27 // pred_check
          %p292 = pneg %p97
        $region34: #{tpu_custom_call.1} parent=27 // pred_check_branch
          %294 = sbr.rel (%p292) target = $region36
        $region35: #{tpu_custom_call.1} parent=27 // pred_region
          %295 = dma.done %s288, 32
        $region36: #{tpu_custom_call.1} parent=27 // pred_fallthru
          _
        %s296 = sand.u32 %s54, 1
        %s297 = scalar_lea.sflag [#allocation7], %s296
        %s298 = sand.u32 %s54, 1
        %s299 = smul.addr %s298, 8
        %s300 = scalar_lea.vmem [#allocation6], %s299
        %p301 = pneg %p67
        %p302 = pneg %p64
        %s303 = sand.u32 %s84, 1
        %s304 = scalar_lea.sflag [#allocation9], %s303
        %s305 = sand.u32 %s84, 1
        %s306 = smul.addr %s305, 2
        %s307 = scalar_lea.vmem [#allocation8], %s306
        %p308 = pneg %p97
        %p309 = pneg %p94
        %p310 = pneg %p125
        %p311 = pneg %p122
        %p312 = scmp.lt.s32.totalorder %s28, 1
        %s313 = scalar_select %p312, %s28, 1
        %p314 = scmp.lt.s32.totalorder %s29, 0
        %s315 = scalar_select %p314, %s29, 0
        %s316 = sadd.s32 %s315, %s313
        %s317 = smul.addr %s316, 4
        %s318 = scalar_lea.vmem %s2, %s317
        %p319 = pneg %p153
        %p320 = pneg %p150
        %p321 = scmp.lt.s32.totalorder %s28, 1
        %s322 = scalar_select %p321, %s28, 1
        %p323 = scmp.lt.s32.totalorder %s29, 0
        %s324 = scalar_select %p323, %s29, 0
        %s325 = sadd.s32 %s324, %s322
        %s326 = smul.addr %s325, 4
        %s327 = scalar_lea.vmem %s3, %s326
        %p328 = pneg %p181
        %p329 = pneg %p178
        %p330 = scmp.lt.s32.totalorder %s28, 1
        %s331 = scalar_select %p330, %s28, 1
        %p332 = scmp.lt.s32.totalorder %s29, 0
        %s333 = scalar_select %p332, %s29, 0
        %s334 = sadd.s32 %s333, %s331
        %s335 = smul.addr %s334, 4
        %s336 = scalar_lea.vmem %s4, %s335
        %p337 = pneg %p209
        %p338 = pneg %p206
        %p339 = scmp.lt.s32.totalorder %s28, 1
        %s340 = scalar_select %p339, %s28, 1
        %p341 = scmp.lt.s32.totalorder %s29, 0
        %s342 = scalar_select %p341, %s29, 0
        %s343 = sadd.s32 %s342, %s340
        %s344 = scalar_lea.vmem %s5, %s343
        %s345 = sadd.s32 %s29, %s30
        %s346 = sadd.s32 %s29, %s30
        %p347 = scmp.lt.s32.totalorder %s28, 1
        %s348 = scalar_select %p347, %s28, 1
        %p349 = scmp.lt.s32.totalorder %s29, 0
        %s350 = scalar_select %p349, %s29, 0
        %s351 = sadd.s32 %s350, %s348
        %s352 = smul.addr %s351, 4
        %s353 = scalar_lea.vmem %s2, %s352
        %p354 = scmp.lt.s32.totalorder %s28, 1
        %s355 = scalar_select %p354, %s28, 1
        %p356 = scmp.lt.s32.totalorder %s29, 0
        %s357 = scalar_select %p356, %s29, 0
        %s358 = sadd.s32 %s357, %s355
        %s359 = smul.addr %s358, 4
        %s360 = scalar_lea.vmem %s3, %s359
        %p361 = scmp.lt.s32.totalorder %s28, 1
        %s362 = scalar_select %p361, %s28, 1
        %p363 = scmp.lt.s32.totalorder %s29, 0
        %s364 = scalar_select %p363, %s29, 0
        %s365 = sadd.s32 %s364, %s362
        %s366 = smul.addr %s365, 4
        %s367 = scalar_lea.vmem %s4, %s366
        %p368 = scmp.lt.s32.totalorder %s28, 1
        %s369 = scalar_select %p368, %s28, 1
        %p370 = scmp.lt.s32.totalorder %s29, 0
        %s371 = scalar_select %p370, %s29, 0
        %s372 = sadd.s32 %s371, %s369
        %s373 = scalar_lea.vmem %s5, %s372
        %p374 = scmp.eq.s32.totalorder %s30, 0
        // Predicated region
        $region37: #{tpu_custom_call.1} parent=27 // pred_check
          %p375 = pneg %p374
        $region38: #{tpu_custom_call.1} parent=27 // pred_check_branch
          %377 = sbr.rel (%p375) target = $region40
        $region39: #{tpu_custom_call.1} parent=27 // pred_region
          %378 = vst [vmem:[#allocation2] sm:$0x3] 0.0
          %379 = vst [vmem:[#allocation2 + $0x2] sm:$0x3] 0.0
          %380 = vst [vmem:[#allocation2 + $0x4] sm:$0x3] 0.0
          %381 = vst [vmem:[#allocation2 + $0x6] sm:$0x3] 0.0
          %382 = vst [vmem:[#allocation3] sm:$0x3] 0.0
          %383 = vst [vmem:[#allocation3 + $0x2] sm:$0x3] 0.0
          %384 = vst [vmem:[#allocation3 + $0x4] sm:$0x3] 0.0
          %385 = vst [vmem:[#allocation3 + $0x6] sm:$0x3] 0.0
          %386 = vst [vmem:[#allocation4] sm:$0x3] 0.0
          %387 = vst [vmem:[#allocation4 + $0x2] sm:$0x3] 0.0
          %388 = vst [vmem:[#allocation4 + $0x4] sm:$0x3] 0.0
          %389 = vst [vmem:[#allocation4 + $0x6] sm:$0x3] 0.0
          %390 = vst [vmem:[#allocation5] sm:$0x3] 0.0
        $region40: #{tpu_custom_call.1} parent=27 // pred_fallthru
          _
        %v391 = vld [vmem:[%s282] sm:$0x3]
        %s392 = scalar_lea.vmem %s282, 2 [#allocation6]
        %v393 = vld [vmem:[%s392] sm:$0x3]
        %s394 = scalar_lea.vmem %s282, 4 [#allocation6]
        %v395 = vld [vmem:[%s394] sm:$0x3]
        %s396 = scalar_lea.vmem %s282, 6 [#allocation6]
        %v397 = vld [vmem:[%s396] sm:$0x3]
        %v398 = vld [vmem:[%s291] sm:$0x3]
        %v399 = vmax.f32 %v391, %v393
        %v400 = vmax.f32 %v399, %v395
        %v401 = vmax.f32 %v400, %v397
        %v402 = vsub.f32 %v391, %v401
        %v403 = vmul.f32 %v402, 1.442695
        %v404 = vpow.pop %v403
        %v405 = vsub.f32 %v393, %v401
        %v406 = vmul.f32 %v405, 1.442695
        %v407 = vpow.pop %v406
        %v408 = vadd.f32 %v404, %v407
        %v409 = vsub.f32 %v395, %v401
        %v410 = vmul.f32 %v409, 1.442695
        %v411 = vpow.pop %v410
        %v412 = vadd.f32 %v408, %v411
        %v413 = vsub.f32 %v397, %v401
        %v414 = vmul.f32 %v413, 1.442695
        %v415 = vpow.pop %v414
        %v416 = vadd.f32 %v412, %v415
        %v417 = vrcp.pop %v416
        %v418 = vmul.f32 %v416, %v417
        %v419 = vsub.f32 2.0, %v418
        %v420 = vmul.f32 %v417, %v419
        %v421 = vlog2.pop %v416
        %v422 = vmul.f32 %v421, 0.6931472
        %vm423 = vcmp.ge.s32.totalorder %v398, 0
        %vm424 = vcmp.lt.s32.totalorder %v398, 4
        %vm425 = vmand %vm423, %vm424
        %v426 = vsel %vm425, 1, 0
        %v427 = vcvt.s32.f32 %v426
        %v428 = vmul.f32 %v420, %v427
        %vm429 = vcmp.eq.s32.totalorder %v398, 0
        %v430 = vsel %vm429, 1, 0
        %v431 = vcvt.s32.f32 %v430
        %v432 = vmul.f32 %v404, %v428
        %v433 = vld [vmem:[#allocation2] sm:$0x3]
        %v434 = vmul.f32 %v432, %v431
        %v435 = vadd.f32 %v433, %v434
        %436 = vst [vmem:[#allocation2] sm:$0x3] %v435
        %v437 = vld [vmem:[#allocation3] sm:$0x3]
        %v438 = vadd.f32 %v437, %v432
        %439 = vst [vmem:[#allocation3] sm:$0x3] %v438
        %v440 = vld [vmem:[#allocation4] sm:$0x3]
        %v441 = vadd.f32 %v440, %v431
        %442 = vst [vmem:[#allocation4] sm:$0x3] %v441
        %v443 = vmul.f32 %v431, %v391
        %vm444 = vcmp.eq.s32.totalorder %v398, 1
        %v445 = vsel %vm444, 1, 0
        %v446 = vcvt.s32.f32 %v445
        %v447 = vmul.f32 %v407, %v428
        %s448 = scalar_lea.vmem [#allocation2], 2
        %v449 = vld [vmem:[%s448] sm:$0x3]
        %v450 = vmul.f32 %v447, %v446
        %v451 = vadd.f32 %v449, %v450
        %452 = vst [vmem:[%s448] sm:$0x3] %v451
        %s453 = scalar_lea.vmem [#allocation3], 2
        %v454 = vld [vmem:[%s453] sm:$0x3]
        %v455 = vadd.f32 %v454, %v447
        %456 = vst [vmem:[%s453] sm:$0x3] %v455
        %s457 = scalar_lea.vmem [#allocation4], 2
        %v458 = vld [vmem:[%s457] sm:$0x3]
        %v459 = vadd.f32 %v458, %v446
        %460 = vst [vmem:[%s457] sm:$0x3] %v459
        %v461 = vmul.f32 %v446, %v393
        %v462 = vadd.f32 %v443, %v461
        %vm463 = vcmp.eq.s32.totalorder %v398, 2
        %v464 = vsel %vm463, 1, 0
        %v465 = vcvt.s32.f32 %v464
        %v466 = vmul.f32 %v411, %v428
        %s467 = scalar_lea.vmem [#allocation2], 4
        %v468 = vld [vmem:[%s467] sm:$0x3]
        %v469 = vmul.f32 %v466, %v465
        %v470 = vadd.f32 %v468, %v469
        %471 = vst [vmem:[%s467] sm:$0x3] %v470
        %s472 = scalar_lea.vmem [#allocation3], 4
        %v473 = vld [vmem:[%s472] sm:$0x3]
        %v474 = vadd.f32 %v473, %v466
        %475 = vst [vmem:[%s472] sm:$0x3] %v474
        %s476 = scalar_lea.vmem [#allocation4], 4
        %v477 = vld [vmem:[%s476] sm:$0x3]
        %v478 = vadd.f32 %v477, %v465
        %479 = vst [vmem:[%s476] sm:$0x3] %v478
        %v480 = vmul.f32 %v465, %v395
        %v481 = vadd.f32 %v462, %v480
        %vm482 = vcmp.eq.s32.totalorder %v398, 3
        %v483 = vsel %vm482, 1, 0
        %v484 = vcvt.s32.f32 %v483
        %v485 = vmul.f32 %v415, %v428
        %s486 = scalar_lea.vmem [#allocation2], 6
        %v487 = vld [vmem:[%s486] sm:$0x3]
        %v488 = vmul.f32 %v485, %v484
        %v489 = vadd.f32 %v487, %v488
        %490 = vst [vmem:[%s486] sm:$0x3] %v489
        %s491 = scalar_lea.vmem [#allocation3], 6
        %v492 = vld [vmem:[%s491] sm:$0x3]
        %v493 = vadd.f32 %v492, %v485
        %494 = vst [vmem:[%s491] sm:$0x3] %v493
        %s495 = scalar_lea.vmem [#allocation4], 6
        %v496 = vld [vmem:[%s495] sm:$0x3]
        %v497 = vadd.f32 %v496, %v484
        %498 = vst [vmem:[%s495] sm:$0x3] %v497
        %v499 = vmul.f32 %v484, %v397
        %v500 = vadd.f32 %v481, %v499
        %v501 = vld [vmem:[#allocation5] sm:$0x3]
        %v502 = vadd.f32 %v401, %v422
        %v503 = vmul.f32 %v427, %v502
        %v504 = vsub.f32 %v503, %v500
        %v505 = vadd.f32 %v501, %v504
        %506 = vst [vmem:[#allocation5] sm:$0x3] %v505
        // Predicated region
        $region41: #{tpu_custom_call.1} parent=27 // pred_check
          %p507 = pneg %p374
        $region42: #{tpu_custom_call.1} parent=27 // pred_check_branch
          %509 = sbr.rel (%p507) target = $region44
        $region43: #{tpu_custom_call.1} parent=27 // pred_region
          %v510 = vld [vmem:[#allocation2] sm:$0x3]
          %v511 = vld [vmem:[#allocation2 + $0x2] sm:$0x3]
          %v512 = vld [vmem:[#allocation2 + $0x4] sm:$0x3]
          %v513 = vld [vmem:[#allocation2 + $0x6] sm:$0x3]
          %vm514 = vcmask 1041408
          %v515 = vsel %vm514, %v510, 0.0
          %516 = vadd.xlane.f32.xlu0 %v515
          %v517 = vpop.xlane.xlu0 %516
          %v518 = vsel %vm514, %v511, 0.0
          %519 = vadd.xlane.f32.xlu0 %v518
          %v520 = vpop.xlane.xlu0 %519
          %v521 = vsel %vm514, %v512, 0.0
          %522 = vadd.xlane.f32.xlu0 %v521
          %v523 = vpop.xlane.xlu0 %522
          %v524 = vsel %vm514, %v513, 0.0
          %525 = vadd.xlane.f32.xlu0 %v524
          %v526 = vpop.xlane.xlu0 %525
          %v531 = vlaneseq
          %v532 = vand.u32 %v531, 127
          %v533 = vlaneseq
          %v534 = vshrl.u32 %v533, 7
          %v535 = vsub.s32 %v532, %v534
          %v536 = vrot.slane %v517, %v535
          %v537 = vlaneseq
          %v538 = vshrl.u32 %v537, 7
          %v539 = vsub.s32 %v532, %v538
          %v540 = vrot.slane %v520, %v539
          %v541 = vlaneseq
          %v542 = vshrl.u32 %v541, 7
          %v543 = vsub.s32 %v532, %v542
          %v544 = vrot.slane %v523, %v543
          %v545 = vlaneseq
          %v546 = vshrl.u32 %v545, 7
          %v547 = vsub.s32 %v532, %v546
          %v548 = vrot.slane %v526, %v547
          %vm549 = vcmask 1041409
          %v550 = vsel %vm549, %v540, %v536
          %vm551 = vcmask 1042434
          %v552 = vsel %vm551, %v544, %v550
          %vm553 = vcmask 1043459
          %v554 = vsel %vm553, %v548, %v552
          %vm556 = vcmask 11264
          %v557 = vsel %vm556, %v554, 0.0
          %558 = vadd.xlane.f32.xlu0 %v557
          %v559 = vpop.xlane.xlu0 %558
          %vm560 = vcmask 3072
          %561 = vst.msk [vmem:[%s353] sm:$0xf] %vm560, %v559
          %v562 = vld [vmem:[#allocation3] sm:$0x3]
          %v563 = vld [vmem:[#allocation3 + $0x2] sm:$0x3]
          %v564 = vld [vmem:[#allocation3 + $0x4] sm:$0x3]
          %v565 = vld [vmem:[#allocation3 + $0x6] sm:$0x3]
          %v566 = vsel %vm514, %v562, 0.0
          %567 = vadd.xlane.f32.xlu0 %v566
          %v568 = vpop.xlane.xlu0 %567
          %v569 = vsel %vm514, %v563, 0.0
          %570 = vadd.xlane.f32.xlu0 %v569
          %v571 = vpop.xlane.xlu0 %570
          %v572 = vsel %vm514, %v564, 0.0
          %573 = vadd.xlane.f32.xlu0 %v572
          %v574 = vpop.xlane.xlu0 %573
          %v575 = vsel %vm514, %v565, 0.0
          %576 = vadd.xlane.f32.xlu0 %v575
          %v577 = vpop.xlane.xlu0 %576
          %v582 = vlaneseq
          %v583 = vshrl.u32 %v582, 7
          %v584 = vsub.s32 %v532, %v583
          %v585 = vrot.slane %v568, %v584
          %v586 = vlaneseq
          %v587 = vshrl.u32 %v586, 7
          %v588 = vsub.s32 %v532, %v587
          %v589 = vrot.slane %v571, %v588
          %v590 = vlaneseq
          %v591 = vshrl.u32 %v590, 7
          %v592 = vsub.s32 %v532, %v591
          %v593 = vrot.slane %v574, %v592
          %v594 = vlaneseq
          %v595 = vshrl.u32 %v594, 7
          %v596 = vsub.s32 %v532, %v595
          %v597 = vrot.slane %v577, %v596
          %v598 = vsel %vm549, %v589, %v585
          %v599 = vsel %vm551, %v593, %v598
          %v600 = vsel %vm553, %v597, %v599
          %v602 = vsel %vm556, %v600, 0.0
          %603 = vadd.xlane.f32.xlu0 %v602
          %v604 = vpop.xlane.xlu0 %603
          %605 = vst.msk [vmem:[%s360] sm:$0xf] %vm560, %v604
          %v606 = vld [vmem:[#allocation4] sm:$0x3]
          %v607 = vld [vmem:[#allocation4 + $0x2] sm:$0x3]
          %v608 = vld [vmem:[#allocation4 + $0x4] sm:$0x3]
          %v609 = vld [vmem:[#allocation4 + $0x6] sm:$0x3]
          %v610 = vsel %vm514, %v606, 0.0
          %611 = vadd.xlane.f32.xlu0 %v610
          %v612 = vpop.xlane.xlu0 %611
          %v613 = vsel %vm514, %v607, 0.0
          %614 = vadd.xlane.f32.xlu0 %v613
          %v615 = vpop.xlane.xlu0 %614
          %v616 = vsel %vm514, %v608, 0.0
          %617 = vadd.xlane.f32.xlu0 %v616
          %v618 = vpop.xlane.xlu0 %617
          %v619 = vsel %vm514, %v609, 0.0
          %620 = vadd.xlane.f32.xlu0 %v619
          %v621 = vpop.xlane.xlu0 %620
          %v626 = vlaneseq
          %v627 = vshrl.u32 %v626, 7
          %v628 = vsub.s32 %v532, %v627
          %v629 = vrot.slane %v612, %v628
          %v630 = vlaneseq
          %v631 = vshrl.u32 %v630, 7
          %v632 = vsub.s32 %v532, %v631
          %v633 = vrot.slane %v615, %v632
          %v634 = vlaneseq
          %v635 = vshrl.u32 %v634, 7
          %v636 = vsub.s32 %v532, %v635
          %v637 = vrot.slane %v618, %v636
          %v638 = vlaneseq
          %v639 = vshrl.u32 %v638, 7
          %v640 = vsub.s32 %v532, %v639
          %v641 = vrot.slane %v621, %v640
          %v642 = vsel %vm549, %v633, %v629
          %v643 = vsel %vm551, %v637, %v642
          %v644 = vsel %vm553, %v641, %v643
          %v646 = vsel %vm556, %v644, 0.0
          %647 = vadd.xlane.f32.xlu0 %v646
          %v648 = vpop.xlane.xlu0 %647
          %649 = vst.msk [vmem:[%s367] sm:$0xf] %vm560, %v648
          %v650 = vld [vmem:[#allocation5] sm:$0x3]
          %v651 = vsel %vm514, %v650, 0.0
          %652 = vadd.xlane.f32.xlu0 %v651
          %v653 = vpop.xlane.xlu0 %652
          %v654 = vsel %vm514, %v653, 0.0
          %v655 = vrot.slane %v654, 4
          %v656 = vadd.f32 %v654, %v655
          %v657 = vrot.slane %v656, 2
          %v658 = vadd.f32 %v656, %v657
          %v659 = vrot.slane %v658, 1
          %v660 = vadd.f32 %v658, %v659
          %vm661 = vcmask 0
          %662 = vst.msk [vmem:[%s373] sm:$0x1] %vm661, %v660
        $region44: #{tpu_custom_call.1} parent=27 // pred_fallthru
          _
        %p663 = scmp.lt.s32.totalorder %s28, 1
        %s664 = scalar_select %p663, %s28, 1
        %p665 = scmp.lt.s32.totalorder %s29, 0
        %s666 = scalar_select %p665, %s29, 0
        %s667 = sadd.s32 %s666, %s664
        %s668 = smul.addr %s667, 4
        %s669 = scalar_lea.vmem %s2, %s668
        %p670 = scmp.lt.s32.totalorder %s28, 1
        %s671 = scalar_select %p670, %s28, 1
        %p672 = scmp.lt.s32.totalorder %s29, 0
        %s673 = scalar_select %p672, %s29, 0
        %s674 = sadd.s32 %s673, %s671
        %s675 = smul.addr %s674, 4
        %s676 = scalar_lea.vmem %s3, %s675
        %p677 = scmp.lt.s32.totalorder %s28, 1
        %s678 = scalar_select %p677, %s28, 1
        %p679 = scmp.lt.s32.totalorder %s29, 0
        %s680 = scalar_select %p679, %s29, 0
        %s681 = sadd.s32 %s680, %s678
        %s682 = smul.addr %s681, 4
        %s683 = scalar_lea.vmem %s4, %s682
        %p684 = scmp.lt.s32.totalorder %s28, 1
        %s685 = scalar_select %p684, %s28, 1
        %p686 = scmp.lt.s32.totalorder %s29, 0
        %s687 = scalar_select %p686, %s29, 0
        %s688 = sadd.s32 %s687, %s685
        %s689 = scalar_lea.vmem %s5, %s688
        // Predicated region
        $region45: #{tpu_custom_call.1} parent=27 // pred_check
          %p690 = pneg %p122
        $region46: #{tpu_custom_call.1} parent=27 // pred_check_branch
          %692 = sbr.rel (%p690) target = $region48
        $region47: #{tpu_custom_call.1} parent=27 // pred_region
          _
        $region48: #{tpu_custom_call.1} parent=27 // pred_fallthru
          _
        // Predicated region
        $region49: #{tpu_custom_call.1} parent=27 // pred_check
          %p693 = pneg %p150
        $region50: #{tpu_custom_call.1} parent=27 // pred_check_branch
          %695 = sbr.rel (%p693) target = $region52
        $region51: #{tpu_custom_call.1} parent=27 // pred_region
          _
        $region52: #{tpu_custom_call.1} parent=27 // pred_fallthru
          _
        // Predicated region
        $region53: #{tpu_custom_call.1} parent=27 // pred_check
          %p696 = pneg %p178
        $region54: #{tpu_custom_call.1} parent=27 // pred_check_branch
          %698 = sbr.rel (%p696) target = $region56
        $region55: #{tpu_custom_call.1} parent=27 // pred_region
          _
        $region56: #{tpu_custom_call.1} parent=27 // pred_fallthru
          _
        // Predicated region
        $region57: #{tpu_custom_call.1} parent=27 // pred_check
          %p699 = pneg %p206
        $region58: #{tpu_custom_call.1} parent=27 // pred_check_branch
          %701 = sbr.rel (%p699) target = $region60
        $region59: #{tpu_custom_call.1} parent=27 // pred_region
          _
        $region60: #{tpu_custom_call.1} parent=27 // pred_fallthru
          _
      $region28: #{tpu_custom_call.1} parent=5 // pred_fallthru
        _
      %p702 = scmp.le.s32.totalorder 2, %s18
      // Predicated region
      $region61: #{tpu_custom_call.1} parent=5 // pred_check
        %p703 = pneg %p702
      $region62: #{tpu_custom_call.1} parent=5 // pred_check_branch
        %705 = sbr.rel (%p703) target = $region64
      $region63: #{tpu_custom_call.1} parent=5 // pred_region
        %s706 = ssub.s32 %s18, 2
        // Predicated region
        $region65: #{tpu_custom_call.1} parent=63 // pred_check
          %p707 = pneg %p128
        $region66: #{tpu_custom_call.1} parent=63 // pred_check_branch
          %709 = sbr.rel (%p707) target = $region68
        $region67: #{tpu_custom_call.1} parent=63 // pred_region
          %p710 = scmp.lt.s32.totalorder %s31, 1
          %s711 = scalar_select %p710, %s31, 1
          %p712 = scmp.lt.s32.totalorder %s32, 0
          %s713 = scalar_select %p712, %s32, 0
          %s714 = sadd.s32 %s713, %s711
          %s715 = smul.addr %s714, 4
          %s716 = scalar_lea.vmem %s2, %s715
        $region68: #{tpu_custom_call.1} parent=63 // pred_fallthru
          _
        // Predicated region
        $region69: #{tpu_custom_call.1} parent=63 // pred_check
          %p717 = pneg %p156
        $region70: #{tpu_custom_call.1} parent=63 // pred_check_branch
          %719 = sbr.rel (%p717) target = $region72
        $region71: #{tpu_custom_call.1} parent=63 // pred_region
          %p720 = scmp.lt.s32.totalorder %s31, 1
          %s721 = scalar_select %p720, %s31, 1
          %p722 = scmp.lt.s32.totalorder %s32, 0
          %s723 = scalar_select %p722, %s32, 0
          %s724 = sadd.s32 %s723, %s721
          %s725 = smul.addr %s724, 4
          %s726 = scalar_lea.vmem %s3, %s725
        $region72: #{tpu_custom_call.1} parent=63 // pred_fallthru
          _
        // Predicated region
        $region73: #{tpu_custom_call.1} parent=63 // pred_check
          %p727 = pneg %p184
        $region74: #{tpu_custom_call.1} parent=63 // pred_check_branch
          %729 = sbr.rel (%p727) target = $region76
        $region75: #{tpu_custom_call.1} parent=63 // pred_region
          %p730 = scmp.lt.s32.totalorder %s31, 1
          %s731 = scalar_select %p730, %s31, 1
          %p732 = scmp.lt.s32.totalorder %s32, 0
          %s733 = scalar_select %p732, %s32, 0
          %s734 = sadd.s32 %s733, %s731
          %s735 = smul.addr %s734, 4
          %s736 = scalar_lea.vmem %s4, %s735
        $region76: #{tpu_custom_call.1} parent=63 // pred_fallthru
          _
        // Predicated region
        $region77: #{tpu_custom_call.1} parent=63 // pred_check
          %p737 = pneg %p212
        $region78: #{tpu_custom_call.1} parent=63 // pred_check_branch
          %739 = sbr.rel (%p737) target = $region80
        $region79: #{tpu_custom_call.1} parent=63 // pred_region
          %p740 = scmp.lt.s32.totalorder %s31, 1
          %s741 = scalar_select %p740, %s31, 1
          %p742 = scmp.lt.s32.totalorder %s32, 0
          %s743 = scalar_select %p742, %s32, 0
          %s744 = sadd.s32 %s743, %s741
          %s745 = scalar_lea.vmem %s5, %s744
        $region80: #{tpu_custom_call.1} parent=63 // pred_fallthru
          _
      $region64: #{tpu_custom_call.1} parent=5 // pred_fallthru
        _
    $region6: #{tpu_custom_call.1} parent=1 // loop_footer
      %s22 = sadd.s32 1, %s18
    $region7: #{tpu_custom_call.1} parent=1 // loop_footer_branch
      %17 = sbr.rel target = $region3
    $region8: #{tpu_custom_call.1} parent=1 // loop_exit
      _
    %746 = vsyncpa [#allocation7], 1
    %s747 = scalar_lea.sflag [#allocation7], 1
    %748 = vsyncpa %s747, 1
    %749 = vsyncpa [#allocation9], 1
    %s750 = scalar_lea.sflag [#allocation9], 1
    %751 = vsyncpa %s750, 1

</llo_original>
